<compile_context>
chip_gen: v6e
topology: v6e:2x2x1
jax: 0.10.0
libtpu: 0.0.40
codegen_flags: <defaults>
</compile_context>

<pallas_src>
import math
import functools

import numpy as np
import jax
import jax.numpy as jnp
from jax.experimental import pallas as pl
from jax.experimental.pallas import tpu as pltpu


def build_pe_table(d_model: int, max_seq_len: int = 80) -> np.ndarray:
    """Exact reproduction of the PyTorch __init__ double loop (incl. its quirky
    exponents: sin uses 2*i/d_model, cos uses 2*(i+1)/d_model)."""
    assert d_model % 2 == 0, "PositionalEncoder requires an even d_model"
    pe = np.zeros((max_seq_len, d_model), dtype=np.float32)
    for pos in range(max_seq_len):
        for i in range(0, d_model, 2):
            pe[pos, i] = math.sin(pos / 10000 ** (2 * i / d_model))
            pe[pos, i + 1] = math.cos(pos / 10000 ** (2 * (i + 1) / d_model))
    return pe  # (max_seq_len, d_model); the PyTorch leading batch dim of 1 is
               # pure broadcasting and is handled by the kernel.


def _pos_enc_kernel(x_ref, pe_ref, o_ref, *, scale):
    # x_ref / o_ref: (TB, S*D) lane-dense row tile.
    # pe_ref:        (1, S*D) constant row, broadcasts over the TB batch rows.
    o_ref[...] = x_ref[...] * scale + pe_ref[...]


def positional_encoder(x: jax.Array, pe_table: jax.Array, d_model: int) -> jax.Array:
    """x: (B, S, D).  pe_table: (max_seq_len, D) float32."""
    B, S, D = x.shape
    assert D == d_model
    scale = math.sqrt(d_model)

    # Glue: pe[:, :seq_len]; cast once host-side so the kernel stays in x.dtype
    # (avoids f32 pe silently promoting a bf16 x inside the kernel).
    SD = S * D
    pe_row = pe_table[:S, :].astype(x.dtype).reshape(1, SD)

    # Lane-dense flattening: last dim of every block is the full S*D width.
    x2 = x.reshape(B, SD)

    # Row-tile sizing: ~2 MiB per x tile keeps 2 x (x + out) double buffers + the
    # single-buffered pe row well under the v5e 16 MiB scoped-VMEM default and
    # v7x's 64 MiB physical VMEM, while each grid step still moves megabytes
    # (amortizing the ~0.35 us per-step overhead).
    itemsize = np.dtype(x.dtype).itemsize
    row_bytes = SD * itemsize
    target_tile_bytes = 2 * 1024 * 1024
    tb = max(1, min(B, target_tile_bytes // max(row_bytes, 1)))
    if tb < B:
        tb = max(8, (tb // 8) * 8)   # keep the sublane (second-to-last) dim a multiple of 8
        tb = min(tb, B)
    grid_b = pl.cdiv(B, tb)

    kernel = functools.partial(_pos_enc_kernel, scale=scale)

    out2 = pl.pallas_call(
        kernel,
        out_shape=jax.ShapeDtypeStruct((B, SD), x.dtype),
        grid=(grid_b,),
        in_specs=[
            pl.BlockSpec((tb, SD), lambda i: (i, 0)),                               # x rows
            pl.BlockSpec((1, SD), lambda i: (0, 0), pipeline_mode=pl.Buffered(1)),  # constant pe
        ],
        out_specs=pl.BlockSpec((tb, SD), lambda i: (i, 0)),
        compiler_params=pltpu.CompilerParams(
            dimension_semantics=("parallel",),   # shards the row grid across v7x's 2 TCs
        ),
    )(x2, pe_row)
    return out2.reshape(B, S, D)


if __name__ == "__main__":
    # Small shapes consistent with the module: batch=2, seq=8, d_model=32.
    B, S, D = 2, 8, 32
    MAX_SEQ_LEN = 80

    key = jax.random.PRNGKey(0)
    x = jax.random.normal(key, (B, S, D), dtype=jnp.float32)

    pe_table = jnp.asarray(build_pe_table(D, MAX_SEQ_LEN))

    out = positional_encoder(x, pe_table, D)
    out = jax.block_until_ready(out)

    # Pure-JAX reference check.
    ref = x * math.sqrt(D) + pe_table[None, :S, :]
    np.testing.assert_allclose(np.asarray(out), np.asarray(ref), rtol=1e-6, atol=1e-6)

    print("KERNEL_OK")
</pallas_src>

<mosaic_0001>
module attributes {stable_mosaic.version = 11 : i64} {
  func.func @_pos_enc_kernel(%arg0: i32, %arg1: memref<2x256xf32, #tpu.memory_space<vmem>>, %arg2: memref<1x256xf32, #tpu.memory_space<vmem>>, %arg3: memref<2x256xf32, #tpu.memory_space<vmem>>) attributes {dimension_semantics = [#tpu.dimension_semantics<parallel>], iteration_bounds = array<i64: 1>, scalar_prefetch = 0 : i64, scratch_operands = 0 : i64, tpu.core_type = #tpu.core_type<tc>, window_params = [{transform_indices = @transform_0, window_bounds = array<i64: 2, 256>}, {pipeline_mode = #tpu.pipeline_mode<synchronous>, transform_indices = @transform_1, window_bounds = array<i64: 1, 256>}, {transform_indices = @transform_2, window_bounds = array<i64: 2, 256>}]} {
    %c0 = arith.constant 0 : index
    %c0_0 = arith.constant 0 : index
    %0 = vector.load %arg1[%c0, %c0_0] : memref<2x256xf32, #tpu.memory_space<vmem>>, vector<2x256xf32>
    %cst = arith.constant 5.65685415 : f32
    %1 = vector.broadcast %cst : f32 to vector<2x256xf32>
    %2 = arith.mulf %0, %1 : vector<2x256xf32>
    %c0_1 = arith.constant 0 : index
    %c0_2 = arith.constant 0 : index
    %3 = vector.load %arg2[%c0_1, %c0_2] : memref<1x256xf32, #tpu.memory_space<vmem>>, vector<1x256xf32>
    %4 = vector.broadcast %3 : vector<1x256xf32> to vector<2x256xf32>
    %5 = arith.addf %2, %4 : vector<2x256xf32>
    %c0_3 = arith.constant 0 : index
    %c0_4 = arith.constant 0 : index
    %6 = vector.load %arg3[%c0_3, %c0_4] : memref<2x256xf32, #tpu.memory_space<vmem>>, vector<2x256xf32>
    tpu.vector_store %arg3[%c0_3, %c0_4], %5 {strides = array<i32>} : memref<2x256xf32, #tpu.memory_space<vmem>>, vector<2x256xf32>,
    return
  }
  func.func @transform_0(%arg0: i32) -> (i32, i32) {
    %c0_i32 = arith.constant 0 : i32
    %c0_i32_0 = arith.constant 0 : i32
    return %arg0, %c0_i32 : i32, i32
  }
  func.func @transform_1(%arg0: i32) -> (i32, i32) {
    %c0_i32 = arith.constant 0 : i32
    %c0_i32_0 = arith.constant 0 : i32
    %c0_i32_1 = arith.constant 0 : i32
    return %c0_i32, %c0_i32_0 : i32, i32
  }
  func.func @transform_2(%arg0: i32) -> (i32, i32) {
    %c0_i32 = arith.constant 0 : i32
    %c0_i32_0 = arith.constant 0 : i32
    return %arg0, %c0_i32 : i32, i32
  }
}

</mosaic_0001>

<llo_original>
// kernel: tpu_custom_call.1
$region0: #{tpu_custom_call.1}
  #allocation0 [shape = 'u32[]', space=smem, size = 0x4, offset = 0x4, fixed_abs, tag = 'smem constant byte address 0x4 - core index']
  #allocation1 [shape = 'u32[144,128]{1,0:T(1,128)}', space=vmem, size = 0x12000, scoped, tag = 'internal scratch']
  %s0 = inlined_call_operand.hbm [shape: f32[2,256], index: 0, kind: input, shape index: {}]
  %s1 = inlined_call_operand.hbm [shape: f32[1,256], index: 1, kind: input, shape index: {}]
  %s2 = inlined_call_operand.hbm [shape: f32[2,256], index: 2, kind: output, shape index: {}]
  %s3 = sld [smem:[#allocation0]]
  $region26: #{tpu_custom_call.1} parent=0
    _
  %s5 = ssub.s32 1, %s3
  %s6 = scalar_select 0, %s5, %s3
  $region1: #{tpu_custom_call.1} parent=0
    #allocation2 [shape = 'u8[2048]{0}', space=vmem, size = 0x800, scoped, tag = 'input window, operand 0, single buffered']
    #allocation3 [shape = 's32[1]{0}', space=sflag, size = 0x4, scoped, tag = 'scoped memory for tpu_custom_call.1']
    #allocation4 [shape = 's32[1]{0}', space=sflag, size = 0x4, scoped, tag = 'scoped memory for tpu_custom_call.1']
    #allocation5 [shape = 'u8[1024]{0}', space=vmem, size = 0x400, scoped, tag = 'input window, operand 1, single buffered']
    #allocation6 [shape = 's32[1]{0}', space=sflag, size = 0x4, scoped, tag = 'scoped memory for tpu_custom_call.1']
    #allocation7 [shape = 'u8[2048]{0}', space=vmem, size = 0x800, scoped, tag = 'output window, operand 0, single buffered']
    %7 = vsyncpa [#allocation3], 0
    %8 = vsyncpa [#allocation6], 0
    %9 = vsyncpa [#allocation4], 0
    // Predicated region
    $region2: #{tpu_custom_call.1} parent=1 // pred_check
      _
    $region3: #{tpu_custom_call.1} parent=1 // pred_check_branch
      %11 = sbr.rel (0) target = $region5
    $region4: #{tpu_custom_call.1} parent=1 // pred_region
      %s13 = ssub.s32 64, 64
      %14 = vsyncadd [#allocation3], %s13
      %s16 = sshll.u32 [#allocation2], 4
      %s17 = int_to_ptr.vmem [resolvable:$true] %s16
      %19 = dma.hbm_to_vmem [thread:$0]  %s0, 64, %s17, [#allocation3]
    $region5: #{tpu_custom_call.1} parent=1 // pred_fallthru
      _
    // Predicated region
    $region6: #{tpu_custom_call.1} parent=1 // pred_check
      _
    $region7: #{tpu_custom_call.1} parent=1 // pred_check_branch
      %21 = sbr.rel (0) target = $region9
    $region8: #{tpu_custom_call.1} parent=1 // pred_region
      %s23 = ssub.s32 32, 32
      %24 = vsyncadd [#allocation6], %s23
      %s26 = sshll.u32 [#allocation5], 4
      %s27 = int_to_ptr.vmem [resolvable:$true] %s26
      %29 = dma.hbm_to_vmem [thread:$0]  %s1, 32, %s27, [#allocation6]
    $region9: #{tpu_custom_call.1} parent=1 // pred_fallthru
      _
    // Predicated region
    $region10: #{tpu_custom_call.1} parent=1 // pred_check
      _
    $region11: #{tpu_custom_call.1} parent=1 // pred_check_branch
      %31 = sbr.rel (0) target = $region13
    $region12: #{tpu_custom_call.1} parent=1 // pred_region
      %32 = dma.done [#allocation3], 64
    $region13: #{tpu_custom_call.1} parent=1 // pred_fallthru
      _
    // Predicated region
    $region14: #{tpu_custom_call.1} parent=1 // pred_check
      _
    $region15: #{tpu_custom_call.1} parent=1 // pred_check_branch
      %34 = sbr.rel (0) target = $region17
    $region16: #{tpu_custom_call.1} parent=1 // pred_region
      %35 = dma.done [#allocation6], 32
    $region17: #{tpu_custom_call.1} parent=1 // pred_fallthru
      _
    %v36 = vld [vmem:[#allocation2] sm:$0xf]
    %v37 = vmul.f32 %v36, 5.656854
    %v38 = vld [vmem:[#allocation5] sm:$0x3]
    %v40 = vlaneseq
    %v41 = vshrl.u32 %v40, 7
    %v42 = vsub.s32 0, %v41
    %v43 = vrot.slane %v38, %v42
    %v44 = vlaneseq
    %v45 = vshrl.u32 %v44, 7
    %v46 = vsub.s32 1, %v45
    %v47 = vrot.slane %v38, %v46
    %v48 = vcombine.low %v43, %v47
    %v50 = vunpack.c.l.s4 1983009808
    %v51 = vunpack.c.0.s8 %v50
    %v52 = vlaneseq
    %v53 = vshrl.u32 %v52, 7
    %v54 = vsub.s32 %v51, %v53
    %v55 = vrot.slane %v48, %v54
    %v57 = vadd.f32 %v37, %v55
    %58 = vst [vmem:[#allocation7] sm:$0xf] %v57
    // Predicated region
    $region18: #{tpu_custom_call.1} parent=1 // pred_check
      _
    $region19: #{tpu_custom_call.1} parent=1 // pred_check_branch
      %60 = sbr.rel (0) target = $region21
    $region20: #{tpu_custom_call.1} parent=1 // pred_region
      %s62 = ssub.s32 64, 64
      %63 = vsyncadd [#allocation4], %s62
      %s65 = sshll.u32 [#allocation7], 4
      %s66 = int_to_ptr.vmem [resolvable:$true] %s65
      %68 = dma.vmem_to_hbm [thread:$0]  %s66, 64, %s2, [#allocation4]
    $region21: #{tpu_custom_call.1} parent=1 // pred_fallthru
      _
    // Predicated region
    $region22: #{tpu_custom_call.1} parent=1 // pred_check
      _
    $region23: #{tpu_custom_call.1} parent=1 // pred_check_branch
      %70 = sbr.rel (0) target = $region25
    $region24: #{tpu_custom_call.1} parent=1 // pred_region
      %71 = dma.done [#allocation4], 64
    $region25: #{tpu_custom_call.1} parent=1 // pred_fallthru
      _
    %72 = vsyncpa [#allocation3], 1
    %73 = vsyncpa [#allocation6], 1
    %74 = vsyncpa [#allocation4], 1

</llo_original>
